<compile_context>
chip_gen: v7x
topology: tpu7x:2x2x1
jax: 0.10.0
libtpu: 0.0.40
codegen_flags: <defaults>
</compile_context>

<pallas_src>
import jax
import jax.numpy as jnp
from jax import lax
from jax.experimental import pallas as pl
from jax.experimental.pallas import tpu as pltpu

BN_EPS = 1e-5
_LANE = 128
_HW_TILE_CAP = 2048            # lanes per HW tile (keeps double-buffered tiles inside VMEM on v7x)
_IMG_BLOCK_TARGET_BYTES = 4 << 20   # ~4 MiB input slab per grid step for small-HW stages
_VPU_UNROLL_MAX_C1 = 16        # below this contraction size the MXU is nearly empty -> use VPU FMAs


def _conv1x1(w, x):
    """w: (C2, C1) f32, x: (C1, T) f32 -> (C2, T) f32.

    Tiny contraction dims: unroll into C1 broadcast FMAs on the VPU.
    Otherwise: MXU matmul with bf16 inputs (native MXU rate) and f32 accumulation."""
    _, c1 = w.shape
    if c1 <= _VPU_UNROLL_MAX_C1:
        acc = w[:, 0:1] * x[0:1, :]
        for c in range(1, c1):
            acc = acc + w[:, c:c + 1] * x[c:c + 1, :]
        return acc.astype(jnp.float32)
    return jnp.dot(w.astype(jnp.bfloat16), x.astype(jnp.bfloat16),
                   preferred_element_type=jnp.float32)


def _lane_partials(y):
    """(C2, T) -> (C2, 128) lane-wise partial sums.

    Full 128-lane chunks are pure VPU adds (no XLU reduce, lane-dense).  A non-aligned tail
    (only hit when T == HW is not a multiple of 128) falls back to one small XLU reduce that
    is masked into lane 0."""
    c2, t = y.shape
    nfull = t // _LANE
    acc = None
    for k in range(nfull):
        chunk = y[:, k * _LANE:(k + 1) * _LANE]
        acc = chunk if acc is None else acc + chunk
    rem = t - nfull * _LANE
    if rem:
        tail = jnp.sum(y[:, nfull * _LANE:], axis=1, keepdims=True)      # (C2, 1)
        lane = lax.broadcasted_iota(jnp.int32, (c2, _LANE), 1)
        tail_wide = jnp.where(lane == 0, tail, 0.0)                      # (C2, 128)
        acc = tail_wide if acc is None else acc + tail_wide
    return acc


def _stats_kernel(x_ref, w_ref, sum_ref, sumsq_ref):
    # x_ref: (nb, C1, T); w_ref: (C2, C1); sum/sumsq: (C2, 128) per-image-block partials.
    @pl.when(pl.program_id(1) == 0)
    def _init():
        sum_ref[...] = jnp.zeros_like(sum_ref)
        sumsq_ref[...] = jnp.zeros_like(sumsq_ref)

    w = w_ref[...]
    s_acc = None
    sq_acc = None
    for i in range(x_ref.shape[0]):
        y = _conv1x1(w, x_ref[i])                 # (C2, T) f32
        ps = _lane_partials(y)
        psq = _lane_partials(y * y)
        s_acc = ps if s_acc is None else s_acc + ps
        sq_acc = psq if sq_acc is None else sq_acc + psq
    sum_ref[...] += s_acc
    sumsq_ref[...] += sq_acc


def _norm_kernel(x_ref, w_ref, scale_ref, shift_ref, o_ref):
    # Recompute y per tile (cheap) and apply fused BN affine + ReLU; lane-dense stores.
    w = w_ref[...]
    scale = scale_ref[...]
    shift = shift_ref[...]
    for i in range(x_ref.shape[0]):
        y = _conv1x1(w, x_ref[i])                 # (C2, T) f32
        o_ref[i] = jnp.maximum(y * scale + shift, 0.0).astype(o_ref.dtype)


def _pick_blocking(N, C1, C2, HW):
    """Return (nb images per step, T lanes per step)."""
    if HW > _HW_TILE_CAP:
        # Tile over HW with lane-aligned divisors; one image per step.
        t = (_HW_TILE_CAP // _LANE) * _LANE
        while t >= _LANE:
            if HW % t == 0:
                return 1, t
            t -= _LANE
        return 1, HW  # no lane-aligned divisor: whole row per image (still tiled over N)
    # Small HW (deep ResNet stages / non-128-multiple spatial): keep the whole row and batch
    # several images per step so DMAs stay large and the grid has enough steps to pipeline.
    per_img = 4 * max(C1, C2) * HW
    nb = max(1, min(N, _IMG_BLOCK_TARGET_BYTES // max(1, per_img)))
    nb = min(nb, max(1, N // 2))      # keep >=2 image blocks so v7x can shard the N axis
    while N % nb:
        nb -= 1
    return nb, HW


def _vmem_limit(in_bytes, out_bytes, const_bytes):
    # double-buffered input, output and constant blocks + headroom; stays within every
    # generation's VMEM (<= 48 MiB of v7x's 64 MiB physical).
    need = 2 * (in_bytes + out_bytes + const_bytes) + (4 << 20)
    return int(min(max(need, 16 << 20), 48 << 20))


def resnet_forward(x_nchw, w, bias, gamma, beta, eps=BN_EPS):
    """x_nchw: (N, C1, H, W) f32; w: (C2, C1); bias/gamma/beta: (C2,). Returns (N, C2, H, W)."""
    N, C1, H, W = x_nchw.shape
    C2 = w.shape[0]
    HW = H * W
    M = N * HW
    # Conv bias is exactly cancelled by the train-mode BN mean subtraction -> drop it.
    del bias

    x3 = x_nchw.reshape(N, C1, HW)   # free view; HW is the lane-dense axis
    nb, T = _pick_blocking(N, C1, C2, HW)
    nblk = N // nb
    grid = (nblk, HW // T)

    x_spec = pl.BlockSpec((nb, C1, T), lambda n, t: (n, 0, t))
    w_spec = pl.BlockSpec((C2, C1), lambda n, t: (0, 0))
    part_spec = pl.BlockSpec((None, C2, _LANE), lambda n, t: (n, 0, 0))

    x_blk_bytes = 4 * nb * C1 * T
    w_bytes = 4 * C2 * C1

    # ---- Pass 1: per-image-block, per-channel sum / sum-of-squares partials ----
    sum_p, sumsq_p = pl.pallas_call(
        _stats_kernel,
        out_shape=(jax.ShapeDtypeStruct((nblk, C2, _LANE), jnp.float32),
                   jax.ShapeDtypeStruct((nblk, C2, _LANE), jnp.float32)),
        grid=grid,
        in_specs=[x_spec, w_spec],
        out_specs=(part_spec, part_spec),
        compiler_params=pltpu.CompilerParams(
            dimension_semantics=("parallel", "arbitrary"),
            vmem_limit_bytes=_vmem_limit(x_blk_bytes, 2 * 4 * C2 * _LANE, w_bytes)),
        cost_estimate=pl.CostEstimate(
            flops=2 * M * C1 * C2 + 3 * M * C2,
            transcendentals=0,
            bytes_accessed=4 * (N * C1 * HW + C2 * C1 + 2 * nblk * C2 * _LANE)),
    )(x3, w)

    # Finalize BN statistics (tiny (C2,) math) and fold into a single scale/shift.
    # TODO(synk): for very large M the E[y^2]-E[y]^2 form can lose precision in f32; a
    # Welford-style combine of the per-block partials would be more robust.
    y_sum = jnp.sum(sum_p, axis=(0, 2))        # (C2,)
    y_sumsq = jnp.sum(sumsq_p, axis=(0, 2))    # (C2,)
    mean = y_sum / M
    var = jnp.maximum(y_sumsq / M - mean * mean, 0.0)
    inv_std = lax.rsqrt(var + eps)
    scale = (gamma * inv_std).reshape(C2, 1).astype(jnp.float32)
    shift = (beta - mean * gamma * inv_std).reshape(C2, 1).astype(jnp.float32)

    vec_spec = pl.BlockSpec((C2, 1), lambda n, t: (0, 0))

    # ---- Pass 2: recompute conv + fused BN affine + ReLU, fully parallel ----
    out3 = pl.pallas_call(
        _norm_kernel,
        out_shape=jax.ShapeDtypeStruct((N, C2, HW), jnp.float32),
        grid=grid,
        in_specs=[x_spec, w_spec, vec_spec, vec_spec],
        out_specs=pl.BlockSpec((nb, C2, T), lambda n, t: (n, 0, t)),
        compiler_params=pltpu.CompilerParams(
            dimension_semantics=("parallel", "parallel"),
            vmem_limit_bytes=_vmem_limit(x_blk_bytes, 4 * nb * C2 * T, w_bytes + 8 * C2)),
        cost_estimate=pl.CostEstimate(
            flops=2 * M * C1 * C2 + 3 * M * C2,
            transcendentals=0,
            bytes_accessed=4 * (N * C1 * HW + N * C2 * HW + C2 * C1 + 2 * C2)),
    )(x3, w, scale, shift)

    return out3.reshape(N, C2, H, W)  # free view back to NCHW


def _reference(x, w, b, gamma, beta, eps=BN_EPS):
    # Plain-JAX reference: 1x1 conv (+bias) -> train-mode BatchNorm2d -> ReLU.
    y = jnp.einsum("oc,nchw->nohw", w, x) + b[None, :, None, None]
    mu = y.mean(axis=(0, 2, 3), keepdims=True)
    var = ((y - mu) ** 2).mean(axis=(0, 2, 3), keepdims=True)
    return jnp.maximum(
        (y - mu) * lax.rsqrt(var + eps) * gamma[None, :, None, None]
        + beta[None, :, None, None], 0.0)


if __name__ == "__main__":
    key = jax.random.PRNGKey(0)

    # Test 1: shapes consistent with resnet(dim1=4, dim2=8) on input (2, 4, 16, 16).
    # Exercises the VPU-unrolled conv (C1 <= 16), lane-aligned HW (256), per-image partials.
    N, C1, C2, H, W = 2, 4, 8, 16, 16
    k1, k2, k3, k4, k5, key = jax.random.split(key, 6)
    x = jax.random.normal(k1, (N, C1, H, W), dtype=jnp.float32)
    w = jax.random.normal(k2, (C2, C1), dtype=jnp.float32) * 0.1
    b = jax.random.normal(k3, (C2,), dtype=jnp.float32) * 0.1
    gamma = 1.0 + 0.1 * jax.random.normal(k4, (C2,), dtype=jnp.float32)
    beta = 0.1 * jax.random.normal(k5, (C2,), dtype=jnp.float32)

    out = jax.block_until_ready(resnet_forward(x, w, b, gamma, beta))
    ref = _reference(x, w, b, gamma, beta)
    assert out.shape == (N, C2, H, W)
    assert bool(jnp.all(out >= 0.0))
    assert bool(jnp.allclose(out, ref, atol=2e-3, rtol=2e-3))

    # Test 2: deeper-stage style shape with non-128-multiple HW (7x7) and larger C1.
    # Exercises the bf16 MXU conv path, multi-image blocking, and the tail lane-partial path.
    N2, C1b, C2b, H2, W2 = 4, 32, 16, 7, 7
    k1, k2, k3, k4, k5, key = jax.random.split(key, 6)
    x2 = jax.random.normal(k1, (N2, C1b, H2, W2), dtype=jnp.float32)
    w2 = jax.random.normal(k2, (C2b, C1b), dtype=jnp.float32) * 0.1
    b2 = jax.random.normal(k3, (C2b,), dtype=jnp.float32) * 0.1
    gamma2 = 1.0 + 0.1 * jax.random.normal(k4, (C2b,), dtype=jnp.float32)
    beta2 = 0.1 * jax.random.normal(k5, (C2b,), dtype=jnp.float32)

    out2 = jax.block_until_ready(resnet_forward(x2, w2, b2, gamma2, beta2))
    ref2 = _reference(x2, w2, b2, gamma2, beta2)
    assert out2.shape == (N2, C2b, H2, W2)
    assert bool(jnp.all(out2 >= 0.0))
    # bf16 conv inputs (f32 accumulation) -> slightly looser tolerance.
    assert bool(jnp.allclose(out2, ref2, atol=3e-2, rtol=3e-2))

    # TODO(synk): running_mean/running_var buffer updates of BatchNorm2d are not emitted
    # (forward activation only).
    print("KERNEL_OK")
</pallas_src>

<mosaic_0001>
module attributes {stable_mosaic.version = 11 : i64} {
  func.func @_stats_kernel(%arg0: i32, %arg1: i32, %arg2: memref<1x4x256xf32, #tpu.memory_space<vmem>>, %arg3: memref<8x4xf32, #tpu.memory_space<vmem>>, %arg4: memref<1x8x128xf32, #tpu.memory_space<vmem>>, %arg5: memref<1x8x128xf32, #tpu.memory_space<vmem>>) attributes {dimension_semantics = [#tpu.dimension_semantics<parallel>, #tpu.dimension_semantics<arbitrary>], iteration_bounds = array<i64: 2, 1>, scalar_prefetch = 0 : i64, scratch_operands = 0 : i64, tpu.core_type = #tpu.core_type<tc>, window_params = [{transform_indices = @transform_0, window_bounds = array<i64: 1, 4, 256>}, {pipeline_mode = #tpu.pipeline_mode<synchronous>, transform_indices = @transform_1, window_bounds = array<i64: 8, 4>}, {transform_indices = @transform_2, window_bounds = array<i64: 1, 8, 128>}, {transform_indices = @transform_3, window_bounds = array<i64: 1, 8, 128>}]} {
    %c0_i32 = arith.constant 0 : i32
    %0 = arith.cmpi eq, %arg1, %c0_i32 : i32
    %1 = arith.extui %0 : i1 to i32
    %c0_i32_0 = arith.constant 0 : i32
    %2 = arith.cmpi ne, %1, %c0_i32_0 : i32
    scf.if %2 {
      %cst = arith.constant 0.000000e+00 : f32
      %48 = vector.broadcast %cst : f32 to vector<8x128xf32>
      %c0_17 = arith.constant 0 : index
      %c0_18 = arith.constant 0 : index
      %c0_19 = arith.constant 0 : index
      %49 = vector.load %arg4[%c0_17, %c0_18, %c0_19] : memref<1x8x128xf32, #tpu.memory_space<vmem>>, vector<1x8x128xf32>
      %50 = vector.shape_cast %49 : vector<1x8x128xf32> to vector<8x128xf32>
      %51 = vector.shape_cast %48 : vector<8x128xf32> to vector<1x8x128xf32>
      tpu.vector_store %arg4[%c0_17, %c0_18, %c0_19], %51 {strides = array<i32>} : memref<1x8x128xf32, #tpu.memory_space<vmem>>, vector<1x8x128xf32>,
      %cst_20 = arith.constant 0.000000e+00 : f32
      %52 = vector.broadcast %cst_20 : f32 to vector<8x128xf32>
      %c0_21 = arith.constant 0 : index
      %c0_22 = arith.constant 0 : index
      %c0_23 = arith.constant 0 : index
      %53 = vector.load %arg5[%c0_21, %c0_22, %c0_23] : memref<1x8x128xf32, #tpu.memory_space<vmem>>, vector<1x8x128xf32>
      %54 = vector.shape_cast %53 : vector<1x8x128xf32> to vector<8x128xf32>
      %55 = vector.shape_cast %52 : vector<8x128xf32> to vector<1x8x128xf32>
      tpu.vector_store %arg5[%c0_21, %c0_22, %c0_23], %55 {strides = array<i32>} : memref<1x8x128xf32, #tpu.memory_space<vmem>>, vector<1x8x128xf32>,
    } else {
    }
    %c0 = arith.constant 0 : index
    %c0_1 = arith.constant 0 : index
    %3 = vector.load %arg3[%c0, %c0_1] : memref<8x4xf32, #tpu.memory_space<vmem>>, vector<8x4xf32>
    %c0_2 = arith.constant 0 : index
    %c0_3 = arith.constant 0 : index
    %c0_4 = arith.constant 0 : index
    %4 = vector.load %arg2[%c0_2, %c0_3, %c0_4] : memref<1x4x256xf32, #tpu.memory_space<vmem>>, vector<1x4x256xf32>
    %5 = vector.shape_cast %4 : vector<1x4x256xf32> to vector<4x256xf32>
    %6 = vector.extract_strided_slice %3 {offsets = [0, 0], sizes = [8, 1], strides = [1, 1]} : vector<8x4xf32> to vector<8x1xf32>
    %7 = vector.extract_strided_slice %5 {offsets = [0, 0], sizes = [1, 256], strides = [1, 1]} : vector<4x256xf32> to vector<1x256xf32>
    %8 = vector.broadcast %6 : vector<8x1xf32> to vector<8x256xf32>
    %9 = vector.broadcast %7 : vector<1x256xf32> to vector<8x256xf32>
    %10 = arith.mulf %8, %9 : vector<8x256xf32>
    %11 = vector.extract_strided_slice %3 {offsets = [0, 1], sizes = [8, 1], strides = [1, 1]} : vector<8x4xf32> to vector<8x1xf32>
    %12 = vector.extract_strided_slice %5 {offsets = [1, 0], sizes = [1, 256], strides = [1, 1]} : vector<4x256xf32> to vector<1x256xf32>
    %13 = vector.broadcast %11 : vector<8x1xf32> to vector<8x256xf32>
    %14 = vector.broadcast %12 : vector<1x256xf32> to vector<8x256xf32>
    %15 = arith.mulf %13, %14 : vector<8x256xf32>
    %16 = arith.addf %10, %15 : vector<8x256xf32>
    %17 = vector.extract_strided_slice %3 {offsets = [0, 2], sizes = [8, 1], strides = [1, 1]} : vector<8x4xf32> to vector<8x1xf32>
    %18 = vector.extract_strided_slice %5 {offsets = [2, 0], sizes = [1, 256], strides = [1, 1]} : vector<4x256xf32> to vector<1x256xf32>
    %19 = vector.broadcast %17 : vector<8x1xf32> to vector<8x256xf32>
    %20 = vector.broadcast %18 : vector<1x256xf32> to vector<8x256xf32>
    %21 = arith.mulf %19, %20 : vector<8x256xf32>
    %22 = arith.addf %16, %21 : vector<8x256xf32>
    %23 = vector.extract_strided_slice %3 {offsets = [0, 3], sizes = [8, 1], strides = [1, 1]} : vector<8x4xf32> to vector<8x1xf32>
    %24 = vector.extract_strided_slice %5 {offsets = [3, 0], sizes = [1, 256], strides = [1, 1]} : vector<4x256xf32> to vector<1x256xf32>
    %25 = vector.broadcast %23 : vector<8x1xf32> to vector<8x256xf32>
    %26 = vector.broadcast %24 : vector<1x256xf32> to vector<8x256xf32>
    %27 = arith.mulf %25, %26 : vector<8x256xf32>
    %28 = arith.addf %22, %27 : vector<8x256xf32>
    %29 = vector.extract_strided_slice %28 {offsets = [0, 0], sizes = [8, 128], strides = [1, 1]} : vector<8x256xf32> to vector<8x128xf32>
    %30 = vector.extract_strided_slice %28 {offsets = [0, 128], sizes = [8, 128], strides = [1, 1]} : vector<8x256xf32> to vector<8x128xf32>
    %31 = arith.addf %29, %30 : vector<8x128xf32>
    %32 = arith.mulf %28, %28 : vector<8x256xf32>
    %33 = vector.extract_strided_slice %32 {offsets = [0, 0], sizes = [8, 128], strides = [1, 1]} : vector<8x256xf32> to vector<8x128xf32>
    %34 = vector.extract_strided_slice %32 {offsets = [0, 128], sizes = [8, 128], strides = [1, 1]} : vector<8x256xf32> to vector<8x128xf32>
    %35 = arith.addf %33, %34 : vector<8x128xf32>
    %c0_5 = arith.constant 0 : index
    %c0_6 = arith.constant 0 : index
    %c0_7 = arith.constant 0 : index
    %36 = vector.load %arg4[%c0_5, %c0_6, %c0_7] : memref<1x8x128xf32, #tpu.memory_space<vmem>>, vector<1x8x128xf32>
    %37 = vector.shape_cast %36 : vector<1x8x128xf32> to vector<8x128xf32>
    %38 = arith.addf %37, %31 : vector<8x128xf32>
    %c0_8 = arith.constant 0 : index
    %c0_9 = arith.constant 0 : index
    %c0_10 = arith.constant 0 : index
    %39 = vector.load %arg4[%c0_8, %c0_9, %c0_10] : memref<1x8x128xf32, #tpu.memory_space<vmem>>, vector<1x8x128xf32>
    %40 = vector.shape_cast %39 : vector<1x8x128xf32> to vector<8x128xf32>
    %41 = vector.shape_cast %38 : vector<8x128xf32> to vector<1x8x128xf32>
    tpu.vector_store %arg4[%c0_8, %c0_9, %c0_10], %41 {strides = array<i32>} : memref<1x8x128xf32, #tpu.memory_space<vmem>>, vector<1x8x128xf32>,
    %c0_11 = arith.constant 0 : index
    %c0_12 = arith.constant 0 : index
    %c0_13 = arith.constant 0 : index
    %42 = vector.load %arg5[%c0_11, %c0_12, %c0_13] : memref<1x8x128xf32, #tpu.memory_space<vmem>>, vector<1x8x128xf32>
    %43 = vector.shape_cast %42 : vector<1x8x128xf32> to vector<8x128xf32>
    %44 = arith.addf %43, %35 : vector<8x128xf32>
    %c0_14 = arith.constant 0 : index
    %c0_15 = arith.constant 0 : index
    %c0_16 = arith.constant 0 : index
    %45 = vector.load %arg5[%c0_14, %c0_15, %c0_16] : memref<1x8x128xf32, #tpu.memory_space<vmem>>, vector<1x8x128xf32>
    %46 = vector.shape_cast %45 : vector<1x8x128xf32> to vector<8x128xf32>
    %47 = vector.shape_cast %44 : vector<8x128xf32> to vector<1x8x128xf32>
    tpu.vector_store %arg5[%c0_14, %c0_15, %c0_16], %47 {strides = array<i32>} : memref<1x8x128xf32, #tpu.memory_space<vmem>>, vector<1x8x128xf32>,
    return
  }
  func.func @transform_0(%arg0: i32, %arg1: i32) -> (i32, i32, i32) {
    %c0_i32 = arith.constant 0 : i32
    %c0_i32_0 = arith.constant 0 : i32
    return %arg0, %c0_i32, %arg1 : i32, i32, i32
  }
  func.func @transform_1(%arg0: i32, %arg1: i32) -> (i32, i32) {
    %c0_i32 = arith.constant 0 : i32
    %c0_i32_0 = arith.constant 0 : i32
    %c0_i32_1 = arith.constant 0 : i32
    return %c0_i32, %c0_i32_0 : i32, i32
  }
  func.func @transform_2(%arg0: i32, %arg1: i32) -> (i32, i32, i32) {
    %c0_i32 = arith.constant 0 : i32
    %c0_i32_0 = arith.constant 0 : i32
    %c0_i32_1 = arith.constant 0 : i32
    return %arg0, %c0_i32, %c0_i32_0 : i32, i32, i32
  }
  func.func @transform_3(%arg0: i32, %arg1: i32) -> (i32, i32, i32) {
    %c0_i32 = arith.constant 0 : i32
    %c0_i32_0 = arith.constant 0 : i32
    %c0_i32_1 = arith.constant 0 : i32
    return %arg0, %c0_i32, %c0_i32_0 : i32, i32, i32
  }
}

</mosaic_0001>

<llo_original>
// kernel: tpu_custom_call.1
$region0: #{tpu_custom_call.1}
  #allocation0 [shape = 'u32[]', space=smem, size = 0x4, offset = 0x4, fixed_abs, tag = 'smem constant byte address 0x4 - core index']
  #allocation1 [shape = 'u32[144,128]{1,0:T(1,128)}', space=vmem, size = 0x12000, scoped, tag = 'internal scratch']
  %s0 = inlined_call_operand.hbm [shape: f32[2,4,256], index: 0, kind: input, shape index: {}]
  %s1 = inlined_call_operand.vmem [shape: f32[8,4], index: 1, kind: input, shape index: {}]
  %s2 = inlined_call_operand.hbm [shape: f32[2,8,128], index: 2, kind: output, shape index: {0}]
  %s3 = inlined_call_operand.hbm [shape: f32[2,8,128], index: 3, kind: output, shape index: {1}]
  %4 = xla_tuple %s2, %s3
  %s5 = sld [smem:[#allocation0]]
  $region57: #{tpu_custom_call.1} parent=0
    _
  %s7 = ssub.s32 1, %s5
  %s8 = scalar_select 0, %s7, %s5
  $region1: #{tpu_custom_call.1} parent=0
    #allocation2 [shape = 'u8[8192]{0}', space=vmem, size = 0x2000, scoped, tag = 'input window, operand 0']
    #allocation3 [shape = 's32[2]{0}', space=sflag, size = 0x8, scoped, tag = 'scoped memory for tpu_custom_call.1']
    #allocation4 [shape = 's32[2]{0}', space=sflag, size = 0x8, scoped, tag = 'scoped memory for tpu_custom_call.1']
    #allocation5 [shape = 'u8[8192]{0}', space=vmem, size = 0x2000, scoped, tag = 'output window, operand 0']
    #allocation6 [shape = 'u8[8192]{0}', space=vmem, size = 0x2000, scoped, tag = 'output window, operand 1']
    #allocation7 [shape = 's32[2]{0}', space=sflag, size = 0x8, scoped, tag = 'scoped memory for tpu_custom_call.1']
    %9 = vsyncpa [#allocation3], 0
    %s10 = scalar_lea.sflag [#allocation3], 1
    %11 = vsyncpa %s10, 0
    %12 = vsyncpa [#allocation4], 0
    %s13 = scalar_lea.sflag [#allocation4], 1
    %14 = vsyncpa %s13, 0
    %15 = vsyncpa [#allocation7], 0
    %s16 = scalar_lea.sflag [#allocation7], 1
    %17 = vsyncpa %s16, 0
    loop: start=0, step=1, limit=4
    $region2: #{tpu_custom_call.1} parent=1 // loop_pre_header
      _
    $region3: #{tpu_custom_call.1} parent=1 // loop_header
      %s19 = sphi 0, %s23
      %p20 = scmp.ge.s32.totalorder %s19, 4
      %s26 = sphi 0, %s38
      %s27 = sphi 0, %s34
      %s28 = sphi 0, %s26
      %s29 = sphi 0, %s27
      %s30 = sphi 0, %s28
      %s31 = sphi 0, %s29
      %s43 = sphi 0, %s45
      %s46 = sphi 0, %s43
      %s47 = sphi 0, %s46
      %s63 = sphi 0, %s47
      %s67 = sphi 0, %s67
      %s69 = sphi 0, %s67
      %s70 = sphi 0, %s69
      %s84 = sphi 0, %s70
      %s90 = sphi 0, %s92
      %s93 = sphi 0, %s90
      %s94 = sphi 0, %s93
      %s110 = sphi 0, %s94
      %s116 = sphi 0, %s118
      %s119 = sphi 0, %s116
      %s120 = sphi 0, %s119
      %s136 = sphi 0, %s120
    $region4: #{tpu_custom_call.1} parent=1 // loop_header_branch
      %22 = sbr.rel (%p20) target = $region8
    $region5: #{tpu_custom_call.1} parent=1 // loop_body
      %s24 = ssub.s32 %s19, 1
      %s25 = ssub.s32 %s19, 2
      %s32 = sadd.s32 1, %s27
      %p33 = scmp.ge.s32.totalorder %s32, 1
      %s34 = scalar_select %p33, 0, %s32
      %s35 = sadd.s32 1, %s26
      %s36 = scalar_select %p33, %s35, %s26
      %p37 = scmp.ge.s32.totalorder %s36, 2
      %s38 = scalar_select %p37, 0, %s36
      %s39 = ssub.s32 %s26, %s38
      %s40 = ssub.s32 %s27, %s34
      %s41 = sor.u32 %s39, %s40
      %p42 = scmp.eq.s32.totalorder %s41, 0
      %s44 = sadd.s32 %s43, 1
      %s45 = scalar_select %p42, %s43, %s44
      %p48 = pneg %p42
      %p49 = scmp.eq.s32.totalorder %s19, 1
      %p50 = por %p48, %p49
      %p51 = scmp.ne.s32.totalorder %s43, %s46
      %p52 = scmp.eq.s32.totalorder %s19, 0
      %p53 = por %p51, %p52
      %p54 = scmp.ne.s32.totalorder %s43, %s46
      %p55 = scmp.eq.s32.totalorder %s24, 1
      %p56 = por %p54, %p55
      %p57 = scmp.ne.s32.totalorder %s46, %s47
      %p58 = scmp.eq.s32.totalorder %s24, 0
      %p59 = por %p57, %p58
      %p60 = scmp.ne.s32.totalorder %s46, %s47
      %p61 = scmp.eq.s32.totalorder %s25, 1
      %p62 = por %p60, %p61
      %p64 = scmp.ne.s32.totalorder %s47, %s63
      %p65 = scmp.eq.s32.totalorder %s25, 0
      %p66 = por %p64, %p65
      %s68 = sadd.s32 %s67, 1
      %p71 = scmp.eq.s32.totalorder %s19, 1
      %p72 = scmp.ne.s32.totalorder %s67, %s69
      %p73 = scmp.eq.s32.totalorder %s19, 0
      %p74 = por %p72, %p73
      %p75 = scmp.ne.s32.totalorder %s67, %s69
      %p76 = scmp.eq.s32.totalorder %s24, 1
      %p77 = por %p75, %p76
      %p78 = scmp.ne.s32.totalorder %s69, %s70
      %p79 = scmp.eq.s32.totalorder %s24, 0
      %p80 = por %p78, %p79
      %p81 = scmp.ne.s32.totalorder %s69, %s70
      %p82 = scmp.eq.s32.totalorder %s25, 1
      %p83 = por %p81, %p82
      %p85 = scmp.ne.s32.totalorder %s70, %s84
      %p86 = scmp.eq.s32.totalorder %s25, 0
      %p87 = por %p85, %p86
      %s88 = ssub.s32 %s26, %s38
      %p89 = scmp.eq.s32.totalorder %s88, 0
      %s91 = sadd.s32 %s90, 1
      %s92 = scalar_select %p89, %s90, %s91
      %p95 = pneg %p89
      %p96 = scmp.eq.s32.totalorder %s19, 1
      %p97 = por %p95, %p96
      %p98 = scmp.ne.s32.totalorder %s90, %s93
      %p99 = scmp.eq.s32.totalorder %s19, 0
      %p100 = por %p98, %p99
      %p101 = scmp.ne.s32.totalorder %s90, %s93
      %p102 = scmp.eq.s32.totalorder %s24, 1
      %p103 = por %p101, %p102
      %p104 = scmp.ne.s32.totalorder %s93, %s94
      %p105 = scmp.eq.s32.totalorder %s24, 0
      %p106 = por %p104, %p105
      %p107 = scmp.ne.s32.totalorder %s93, %s94
      %p108 = scmp.eq.s32.totalorder %s25, 1
      %p109 = por %p107, %p108
      %p111 = scmp.ne.s32.totalorder %s94, %s110
      %p112 = scmp.eq.s32.totalorder %s25, 0
      %p113 = por %p111, %p112
      %s114 = ssub.s32 %s26, %s38
      %p115 = scmp.eq.s32.totalorder %s114, 0
      %s117 = sadd.s32 %s116, 1
      %s118 = scalar_select %p115, %s116, %s117
      %p121 = pneg %p115
      %p122 = scmp.eq.s32.totalorder %s19, 1
      %p123 = por %p121, %p122
      %p124 = scmp.ne.s32.totalorder %s116, %s119
      %p125 = scmp.eq.s32.totalorder %s19, 0
      %p126 = por %p124, %p125
      %p127 = scmp.ne.s32.totalorder %s116, %s119
      %p128 = scmp.eq.s32.totalorder %s24, 1
      %p129 = por %p127, %p128
      %p130 = scmp.ne.s32.totalorder %s119, %s120
      %p131 = scmp.eq.s32.totalorder %s24, 0
      %p132 = por %p130, %p131
      %p133 = scmp.ne.s32.totalorder %s119, %s120
      %p134 = scmp.eq.s32.totalorder %s25, 1
      %p135 = por %p133, %p134
      %p137 = scmp.ne.s32.totalorder %s120, %s136
      %p138 = scmp.eq.s32.totalorder %s25, 0
      %p139 = por %p137, %p138
      %p140 = scmp.le.s32.totalorder 1, %s19
      %p141 = scmp.lt.s32.totalorder %s19, 3
      %p142 = pnand %p140, %p141
      %p143 = pneg %p142
      // Predicated region
      $region9: #{tpu_custom_call.1} parent=5 // pred_check
        _
      $region10: #{tpu_custom_call.1} parent=5 // pred_check_branch
        %145 = sbr.rel (%p142) target = $region12
      $region11: #{tpu_custom_call.1} parent=5 // pred_region
        %s146 = ssub.s32 %s19, 1
        // Predicated region
        $region13: #{tpu_custom_call.1} parent=11 // pred_check
          %p147 = pneg %p80
        $region14: #{tpu_custom_call.1} parent=11 // pred_check_branch
          %149 = sbr.rel (%p147) target = $region16
        $region15: #{tpu_custom_call.1} parent=11 // pred_region
          _
        $region16: #{tpu_custom_call.1} parent=11 // pred_fallthru
          _
      $region12: #{tpu_custom_call.1} parent=5 // pred_fallthru
        _
      %p150 = scmp.lt.s32.totalorder %s19, 2
      // Predicated region
      $region17: #{tpu_custom_call.1} parent=5 // pred_check
        %p151 = pneg %p150
      $region18: #{tpu_custom_call.1} parent=5 // pred_check_branch
        %153 = sbr.rel (%p151) target = $region20
      $region19: #{tpu_custom_call.1} parent=5 // pred_region
        // Predicated region
        $region21: #{tpu_custom_call.1} parent=19 // pred_check
          %p154 = pneg %p53
        $region22: #{tpu_custom_call.1} parent=19 // pred_check_branch
          %156 = sbr.rel (%p154) target = $region24
        $region23: #{tpu_custom_call.1} parent=19 // pred_region
          %s157 = sand.u32 %s43, 1
          %s158 = scalar_lea.sflag [#allocation3], %s157
          %s159 = sand.u32 %s43, 1
          %s160 = smul.addr %s159, 8
          %s161 = scalar_lea.vmem [#allocation2], %s160
          %s162 = smul.u32 2, %s27
          %s164 = ssub.s32 128, 128
          %165 = vsyncadd %s158, %s164
          %s166 = smul.addr %s26, 2
          %s167 = sadd.s32 %s162, %s166
          %s168 = smul.addr %s167, 64
          %s169 = scalar_lea.hbm %s0, %s168
          %s171 = sshll.u32 %s161, 4
          %s172 = int_to_ptr.vmem [resolvable:$true] %s171
          %174 = dma.hbm_to_vmem [thread:$0]  %s169, 128, %s172, %s158
        $region24: #{tpu_custom_call.1} parent=19 // pred_fallthru
          _
      $region20: #{tpu_custom_call.1} parent=5 // pred_fallthru
        _
      %p175 = scmp.le.s32.totalorder 1, %s19
      %p176 = scmp.lt.s32.totalorder %s19, 3
      %p177 = pnand %p175, %p176
      %p178 = pneg %p177
      // Predicated region
      $region25: #{tpu_custom_call.1} parent=5 // pred_check
        _
      $region26: #{tpu_custom_call.1} parent=5 // pred_check_branch
        %180 = sbr.rel (%p177) target = $region28
      $region27: #{tpu_custom_call.1} parent=5 // pred_region
        %s181 = ssub.s32 %s19, 1
        %s182 = sand.u32 %s46, 1
        %s183 = scalar_lea.sflag [#allocation3], %s182
        %s184 = sand.u32 %s46, 1
        %s185 = smul.addr %s184, 8
        %s186 = scalar_lea.vmem [#allocation2], %s185
        // Predicated region
        $region29: #{tpu_custom_call.1} parent=27 // pred_check
          %p187 = pneg %p59
        $region30: #{tpu_custom_call.1} parent=27 // pred_check_branch
          %189 = sbr.rel (%p187) target = $region32
        $region31: #{tpu_custom_call.1} parent=27 // pred_region
          %190 = dma.done %s183, 128
        $region32: #{tpu_custom_call.1} parent=27 // pred_fallthru
          _
        %s191 = sand.u32 %s46, 1
        %s192 = scalar_lea.sflag [#allocation3], %s191
        %s193 = sand.u32 %s46, 1
        %s194 = smul.addr %s193, 8
        %s195 = scalar_lea.vmem [#allocation2], %s194
        %p196 = pneg %p59
        %p197 = pneg %p56
        %p198 = pneg %p80
        %p199 = pneg %p77
        %p200 = pneg %p106
        %p201 = pneg %p103
        %s202 = sand.u32 %s93, 1
        %s203 = scalar_lea.sflag [#allocation4], %s202
        %s204 = sand.u32 %s93, 1
        %s205 = smul.addr %s204, 8
        %s206 = scalar_lea.vmem [#allocation5], %s205
        %p207 = pneg %p132
        %p208 = pneg %p129
        %s209 = sand.u32 %s119, 1
        %s210 = scalar_lea.sflag [#allocation7], %s209
        %s211 = sand.u32 %s119, 1
        %s212 = smul.addr %s211, 8
        %s213 = scalar_lea.vmem [#allocation6], %s212
        %s214 = smul.u32 2, %s29
        %p215 = scmp.eq.s32.totalorder %s29, 0
        // Predicated region
        $region33: #{tpu_custom_call.1} parent=27 // pred_check
          %p216 = pneg %p215
        $region34: #{tpu_custom_call.1} parent=27 // pred_check_branch
          %218 = sbr.rel (%p216) target = $region36
        $region35: #{tpu_custom_call.1} parent=27 // pred_region
          %219 = vst [vmem:[%s206] sm:$0xff] 0.0
          %220 = vst [vmem:[%s213] sm:$0xff] 0.0
        $region36: #{tpu_custom_call.1} parent=27 // pred_fallthru
          _
        %v221 = vld [vmem:[%s1] sm:$0xff]
        %v222 = vld [vmem:[%s186] sm:$0xff]
        %224 = vset.pattern.permute.xlu0 0
        %225 = vperm.xlu0 %224, %v221
        %v226 = vpop.permute.xlu0 %225
        %v229 = vlaneseq
        %v230 = vshrl.u32 %v229, 7
        %v231 = vsub.s32 0, %v230
        %v232 = vrot.slane %v222, %v231
        %v233 = vlaneseq
        %v234 = vshrl.u32 %v233, 7
        %v235 = vsub.s32 4, %v234
        %v236 = vrot.slane %v222, %v235
        %v239 = vlaneseq
        %v240 = vshrl.u32 %v239, 7
        %v241 = vsub.s32 0, %v240
        %v242 = vrot.slane %v232, %v241
        %v243 = vlaneseq
        %v244 = vshrl.u32 %v243, 7
        %v245 = vsub.s32 0, %v244
        %v246 = vrot.slane %v236, %v245
        %v247 = vmul.f32 %v226, %v242
        %v248 = vmul.f32 %v226, %v246
        %249 = vset.pattern.permute.xlu0 1
        %250 = vperm.xlu0 %249, %v221
        %v251 = vpop.permute.xlu0 %250
        %v253 = vlaneseq
        %v254 = vshrl.u32 %v253, 7
        %v255 = vsub.s32 1, %v254
        %v256 = vrot.slane %v222, %v255
        %v257 = vlaneseq
        %v258 = vshrl.u32 %v257, 7
        %v259 = vsub.s32 5, %v258
        %v260 = vrot.slane %v222, %v259
        %v263 = vlaneseq
        %v264 = vshrl.u32 %v263, 7
        %v265 = vsub.s32 1, %v264
        %v266 = vrot.slane %v256, %v265
        %v267 = vlaneseq
        %v268 = vshrl.u32 %v267, 7
        %v269 = vsub.s32 1, %v268
        %v270 = vrot.slane %v260, %v269
        %v271 = vmul.f32 %v251, %v266
        %v272 = vmul.f32 %v251, %v270
        %v273 = vadd.f32 %v247, %v271
        %v274 = vadd.f32 %v248, %v272
        %275 = vset.pattern.permute.xlu0 2
        %276 = vperm.xlu0 %275, %v221
        %v277 = vpop.permute.xlu0 %276
        %v279 = vlaneseq
        %v280 = vshrl.u32 %v279, 7
        %v281 = vsub.s32 2, %v280
        %v282 = vrot.slane %v222, %v281
        %v283 = vlaneseq
        %v284 = vshrl.u32 %v283, 7
        %v285 = vsub.s32 6, %v284
        %v286 = vrot.slane %v222, %v285
        %v289 = vlaneseq
        %v290 = vshrl.u32 %v289, 7
        %v291 = vsub.s32 2, %v290
        %v292 = vrot.slane %v282, %v291
        %v293 = vlaneseq
        %v294 = vshrl.u32 %v293, 7
        %v295 = vsub.s32 2, %v294
        %v296 = vrot.slane %v286, %v295
        %v297 = vmul.f32 %v277, %v292
        %v298 = vmul.f32 %v277, %v296
        %v299 = vadd.f32 %v273, %v297
        %v300 = vadd.f32 %v274, %v298
        %301 = vset.pattern.permute.xlu0 3
        %302 = vperm.xlu0 %301, %v221
        %v303 = vpop.permute.xlu0 %302
        %v305 = vlaneseq
        %v306 = vshrl.u32 %v305, 7
        %v307 = vsub.s32 3, %v306
        %v308 = vrot.slane %v222, %v307
        %v309 = vlaneseq
        %v310 = vshrl.u32 %v309, 7
        %v311 = vsub.s32 7, %v310
        %v312 = vrot.slane %v222, %v311
        %v315 = vlaneseq
        %v316 = vshrl.u32 %v315, 7
        %v317 = vsub.s32 3, %v316
        %v318 = vrot.slane %v308, %v317
        %v319 = vlaneseq
        %v320 = vshrl.u32 %v319, 7
        %v321 = vsub.s32 3, %v320
        %v322 = vrot.slane %v312, %v321
        %v323 = vmul.f32 %v303, %v318
        %v324 = vmul.f32 %v303, %v322
        %v325 = vadd.f32 %v299, %v323
        %v326 = vadd.f32 %v300, %v324
        %v327 = vadd.f32 %v325, %v326
        %v328 = vmul.f32 %v325, %v325
        %v329 = vmul.f32 %v326, %v326
        %v330 = vadd.f32 %v328, %v329
        %v331 = vld [vmem:[%s206] sm:$0xff]
        %v332 = vadd.f32 %v331, %v327
        %333 = vst [vmem:[%s206] sm:$0xff] %v332
        %v334 = vld [vmem:[%s213] sm:$0xff]
        %v335 = vadd.f32 %v334, %v330
        %336 = vst [vmem:[%s213] sm:$0xff] %v335
        %s337 = sand.u32 %s93, 1
        %s338 = scalar_lea.sflag [#allocation4], %s337
        %s339 = sand.u32 %s93, 1
        %s340 = smul.addr %s339, 8
        %s341 = scalar_lea.vmem [#allocation5], %s340
        %s342 = sand.u32 %s119, 1
        %s343 = scalar_lea.sflag [#allocation7], %s342
        %s344 = sand.u32 %s119, 1
        %s345 = smul.addr %s344, 8
        %s346 = scalar_lea.vmem [#allocation6], %s345
        // Predicated region
        $region37: #{tpu_custom_call.1} parent=27 // pred_check
          %p347 = pneg %p103
        $region38: #{tpu_custom_call.1} parent=27 // pred_check_branch
          %349 = sbr.rel (%p347) target = $region40
        $region39: #{tpu_custom_call.1} parent=27 // pred_region
          %s351 = ssub.s32 128, 128
          %352 = vsyncadd %s338, %s351
          %s353 = smul.addr %s28, 128
          %s354 = scalar_lea.hbm %s2, %s353
          %s356 = sshll.u32 %s341, 4
          %s357 = int_to_ptr.vmem [resolvable:$true] %s356
          %359 = dma.vmem_to_hbm [thread:$0]  %s357, 128, %s354, %s338
        $region40: #{tpu_custom_call.1} parent=27 // pred_fallthru
          _
        // Predicated region
        $region41: #{tpu_custom_call.1} parent=27 // pred_check
          %p360 = pneg %p129
        $region42: #{tpu_custom_call.1} parent=27 // pred_check_branch
          %362 = sbr.rel (%p360) target = $region44
        $region43: #{tpu_custom_call.1} parent=27 // pred_region
          %s364 = ssub.s32 128, 128
          %365 = vsyncadd %s343, %s364
          %s366 = smul.addr %s28, 128
          %s367 = scalar_lea.hbm %s3, %s366
          %s369 = sshll.u32 %s346, 4
          %s370 = int_to_ptr.vmem [resolvable:$true] %s369
          %372 = dma.vmem_to_hbm [thread:$0]  %s370, 128, %s367, %s343
        $region44: #{tpu_custom_call.1} parent=27 // pred_fallthru
          _
      $region28: #{tpu_custom_call.1} parent=5 // pred_fallthru
        _
      %p373 = scmp.le.s32.totalorder 2, %s19
      // Predicated region
      $region45: #{tpu_custom_call.1} parent=5 // pred_check
        %p374 = pneg %p373
      $region46: #{tpu_custom_call.1} parent=5 // pred_check_branch
        %376 = sbr.rel (%p374) target = $region48
      $region47: #{tpu_custom_call.1} parent=5 // pred_region
        %s377 = ssub.s32 %s19, 2
        // Predicated region
        $region49: #{tpu_custom_call.1} parent=47 // pred_check
          %p378 = pneg %p109
        $region50: #{tpu_custom_call.1} parent=47 // pred_check_branch
          %380 = sbr.rel (%p378) target = $region52
        $region51: #{tpu_custom_call.1} parent=47 // pred_region
          %s381 = sand.u32 %s94, 1
          %s382 = scalar_lea.sflag [#allocation4], %s381
          %s383 = sand.u32 %s94, 1
          %s384 = smul.addr %s383, 8
          %s385 = scalar_lea.vmem [#allocation5], %s384
          %386 = dma.done %s382, 128
        $region52: #{tpu_custom_call.1} parent=47 // pred_fallthru
          _
        // Predicated region
        $region53: #{tpu_custom_call.1} parent=47 // pred_check
          %p387 = pneg %p135
        $region54: #{tpu_custom_call.1} parent=47 // pred_check_branch
          %389 = sbr.rel (%p387) target = $region56
        $region55: #{tpu_custom_call.1} parent=47 // pred_region
          %s390 = sand.u32 %s120, 1
          %s391 = scalar_lea.sflag [#allocation7], %s390
          %s392 = sand.u32 %s120, 1
          %s393 = smul.addr %s392, 8
          %s394 = scalar_lea.vmem [#allocation6], %s393
          %395 = dma.done %s391, 128
        $region56: #{tpu_custom_call.1} parent=47 // pred_fallthru
          _
      $region48: #{tpu_custom_call.1} parent=5 // pred_fallthru
        _
    $region6: #{tpu_custom_call.1} parent=1 // loop_footer
      %s23 = sadd.s32 1, %s19
    $region7: #{tpu_custom_call.1} parent=1 // loop_footer_branch
      %18 = sbr.rel target = $region3
    $region8: #{tpu_custom_call.1} parent=1 // loop_exit
      _
    %396 = vsyncpa [#allocation3], 1
    %s397 = scalar_lea.sflag [#allocation3], 1
    %398 = vsyncpa %s397, 1
    %399 = vsyncpa [#allocation4], 1
    %s400 = scalar_lea.sflag [#allocation4], 1
    %401 = vsyncpa %s400, 1
    %402 = vsyncpa [#allocation7], 1
    %s403 = scalar_lea.sflag [#allocation7], 1
    %404 = vsyncpa %s403, 1

</llo_original>
